<compile_context>
chip_gen: v7x
topology: tpu7x:2x2x1
jax: 0.10.0
libtpu: 0.0.40
codegen_flags: <defaults>
</compile_context>

<pallas_src>
import jax
import jax.numpy as jnp
from jax.experimental import pallas as pl
from jax.experimental.pallas import tpu as pltpu


def _round_up(x, m):
    return ((x + m - 1) // m) * m


def _fused_encoder_kernel(x_ref, w1a_ref, w1b_ref, b1a_ref, b1b_ref,
                          w2_ref, b2_ref, o_ref):
    # x_ref: (TB, Cin*T)   w1a/w1b: (Cin*T, Cout*T/2)   b1a/b1b: (1, Cout*T/2)
    # w2: (Cout*T/2, out)  b2: (1, out)                  o_ref: (TB, out)
    x = x_ref[...]
    h_even = jnp.dot(x, w1a_ref[...],
                     preferred_element_type=jnp.float32) + b1a_ref[...]
    h_odd = jnp.dot(x, w1b_ref[...],
                    preferred_element_type=jnp.float32) + b1b_ref[...]
    # MaxPool1d(kernel=2) followed by ReLU (the two commute).
    z = jnp.maximum(jnp.maximum(h_even, h_odd), 0.0)
    y = jnp.dot(z, w2_ref[...],
                preferred_element_type=jnp.float32) + b2_ref[...]
    o_ref[...] = y.astype(o_ref.dtype)


def _fold_conv_bn(conv_w, conv_b, gamma, beta, mean, var, eps, t_len):
    """Fold Conv1d(k, pad=k//2) + eval-mode BatchNorm1d into a dense GEMM.

    Returns (W1a, W1b, b1a, b1b): mappings from the flattened (Cin*T) input to
    the conv+BN output at even / odd time positions, column layout
    [co * (T//2) + j] — identical to PyTorch's Flatten order after pooling.
    """
    c_out, c_in, k = conv_w.shape
    pad = k // 2
    t_half = t_len // 2

    t_in = jnp.arange(t_len)[:, None]    # (T, 1)
    t_out = jnp.arange(t_len)[None, :]   # (1, T)

    # W[ci, t_in, co, t_out] = conv_w[co, ci, kk] where t_in == t_out + kk - pad
    w_big = jnp.zeros((c_in, t_len, c_out, t_len), dtype=conv_w.dtype)
    for kk in range(k):
        mask = (t_in == (t_out + kk - pad)).astype(conv_w.dtype)      # (T, T)
        w_big = w_big + (conv_w[:, :, kk].T[:, None, :, None]
                         * mask[None, :, None, :])

    scale = gamma / jnp.sqrt(var + eps)                               # (Cout,)
    shift = beta - mean * scale
    w_big = w_big * scale[None, None, :, None]
    b_big = (conv_b * scale + shift)[:, None] * jnp.ones((1, t_len),
                                                         conv_w.dtype)  # (Cout, T)

    w1a = w_big[:, :, :, 0::2].reshape(c_in * t_len, c_out * t_half)
    w1b = w_big[:, :, :, 1::2].reshape(c_in * t_len, c_out * t_half)
    b1a = b_big[:, 0::2].reshape(1, c_out * t_half)
    b1b = b_big[:, 1::2].reshape(1, c_out * t_half)
    return w1a, w1b, b1a, b1b


def cnn_encoder_forward(x, conv_w, conv_b, gamma, beta, mean, var, fc_w, fc_b,
                        *, eps=1e-5, block_rows=1024):
    """Fused CnnEncoder forward.  x: (B, Cin, T) float32 -> (B, output_size)."""
    b, c_in, t_len = x.shape
    c_out = conv_w.shape[0]
    t_half = t_len // 2
    feat_in = c_in * t_len            # flattened input features
    feat_mid = c_out * t_half         # features after pool + flatten
    out_features = fc_w.shape[0]

    w1a, w1b, b1a, b1b = _fold_conv_bn(conv_w, conv_b, gamma, beta, mean, var,
                                       eps, t_len)
    w2 = fc_w.T                                   # (feat_mid, out_features)
    b2 = fc_b.reshape(1, out_features)

    # Batch tile: multiple of 8 (sublane), capped so VMEM stays bounded.
    tb = min(block_rows, _round_up(b, 8))
    b_pad = _round_up(b, tb)

    x_flat = x.reshape(b, feat_in)
    if b_pad != b:
        x_flat = jnp.pad(x_flat, ((0, b_pad - b), (0, 0)))

    grid = (b_pad // tb,)

    out = pl.pallas_call(
        _fused_encoder_kernel,
        out_shape=jax.ShapeDtypeStruct((b_pad, out_features), jnp.float32),
        grid=grid,
        in_specs=[
            pl.BlockSpec((tb, feat_in), lambda i: (i, 0)),             # x tile
            pl.BlockSpec((feat_in, feat_mid), lambda i: (0, 0)),       # conv+BN (even t)
            pl.BlockSpec((feat_in, feat_mid), lambda i: (0, 0)),       # conv+BN (odd t)
            pl.BlockSpec((1, feat_mid), lambda i: (0, 0)),             # bias (even t)
            pl.BlockSpec((1, feat_mid), lambda i: (0, 0)),             # bias (odd t)
            pl.BlockSpec((feat_mid, out_features), lambda i: (0, 0)),  # fc weight
            pl.BlockSpec((1, out_features), lambda i: (0, 0)),         # fc bias
        ],
        out_specs=pl.BlockSpec((tb, out_features), lambda i: (i, 0)),
        compiler_params=pltpu.CompilerParams(
            dimension_semantics=("parallel",),        # megacore on v7x
            vmem_limit_bytes=32 * 1024 * 1024,        # explicit; safe on v5e/v6e/v7x
        ),
    )(x_flat, w1a, w1b, b1a, b1b, w2, b2)

    return out[:b]


def _reference_forward(x, conv_w, conv_b, gamma, beta, mean, var, fc_w, fc_b, eps):
    conv = jax.lax.conv_general_dilated(
        x, conv_w, window_strides=(1,), padding=((1, 1),),
        dimension_numbers=("NCH", "OIH", "NCH"))
    conv = conv + conv_b[None, :, None]
    bn = ((conv - mean[None, :, None])
          * (gamma / jnp.sqrt(var + eps))[None, :, None]
          + beta[None, :, None])
    bsz, c, t_len = bn.shape
    pooled = bn.reshape(bsz, c, t_len // 2, 2).max(axis=-1)
    act = jnp.maximum(pooled, 0.0)
    flat = act.reshape(bsz, -1)
    return flat @ fc_w.T + fc_b


if __name__ == "__main__":
    key = jax.random.PRNGKey(0)
    keys = jax.random.split(key, 8)

    # Small shapes consistent with the module: X is (N, Ft, T) with Ft=4, T=20.
    B, C_IN, T = 16, 4, 20
    C_OUT = 2 * C_IN            # n_blocks=1 doubles the channels
    K = 3
    OUT_SIZE = 16
    EPS = 1e-5

    x = jax.random.uniform(keys[0], (B, C_IN, T), dtype=jnp.float32)

    conv_bound = 1.0 / (C_IN * K) ** 0.5
    conv_w = jax.random.uniform(keys[1], (C_OUT, C_IN, K), minval=-conv_bound,
                                maxval=conv_bound, dtype=jnp.float32)
    conv_b = jax.random.uniform(keys[2], (C_OUT,), minval=-conv_bound,
                                maxval=conv_bound, dtype=jnp.float32)

    gamma = jax.random.uniform(keys[3], (C_OUT,), minval=0.5, maxval=1.5,
                               dtype=jnp.float32)
    beta = jax.random.uniform(keys[4], (C_OUT,), minval=-0.5, maxval=0.5,
                              dtype=jnp.float32)
    run_mean = jax.random.uniform(keys[5], (C_OUT,), minval=-0.5, maxval=0.5,
                                  dtype=jnp.float32)
    run_var = jax.random.uniform(keys[6], (C_OUT,), minval=0.5, maxval=1.5,
                                 dtype=jnp.float32)

    fc_in = (T // 2) * C_OUT
    fc_bound = 1.0 / fc_in ** 0.5
    k_fc_w, k_fc_b = jax.random.split(keys[7])
    fc_w = jax.random.uniform(k_fc_w, (OUT_SIZE, fc_in), minval=-fc_bound,
                              maxval=fc_bound, dtype=jnp.float32)
    fc_b = jax.random.uniform(k_fc_b, (OUT_SIZE,), minval=-fc_bound,
                              maxval=fc_bound, dtype=jnp.float32)

    out = cnn_encoder_forward(x, conv_w, conv_b, gamma, beta, run_mean, run_var,
                              fc_w, fc_b, eps=EPS)
    jax.block_until_ready(out)

    ref = _reference_forward(x, conv_w, conv_b, gamma, beta, run_mean, run_var,
                             fc_w, fc_b, EPS)
    assert out.shape == (B, OUT_SIZE), out.shape
    assert jnp.allclose(out, ref, atol=1e-4, rtol=1e-4), \
        float(jnp.max(jnp.abs(out - ref)))

    print("KERNEL_OK")
</pallas_src>

<mosaic_0001>
module attributes {stable_mosaic.version = 11 : i64} {
  func.func @_fused_encoder_kernel(%arg0: i32, %arg1: memref<16x80xf32, #tpu.memory_space<vmem>>, %arg2: memref<80x80xf32, #tpu.memory_space<vmem>>, %arg3: memref<80x80xf32, #tpu.memory_space<vmem>>, %arg4: memref<1x80xf32, #tpu.memory_space<vmem>>, %arg5: memref<1x80xf32, #tpu.memory_space<vmem>>, %arg6: memref<80x16xf32, #tpu.memory_space<vmem>>, %arg7: memref<1x16xf32, #tpu.memory_space<vmem>>, %arg8: memref<16x16xf32, #tpu.memory_space<vmem>>) attributes {dimension_semantics = [#tpu.dimension_semantics<parallel>], iteration_bounds = array<i64: 1>, scalar_prefetch = 0 : i64, scratch_operands = 0 : i64, tpu.core_type = #tpu.core_type<tc>, window_params = [{transform_indices = @transform_0, window_bounds = array<i64: 16, 80>}, {pipeline_mode = #tpu.pipeline_mode<synchronous>, transform_indices = @transform_1, window_bounds = array<i64: 80, 80>}, {pipeline_mode = #tpu.pipeline_mode<synchronous>, transform_indices = @transform_2, window_bounds = array<i64: 80, 80>}, {pipeline_mode = #tpu.pipeline_mode<synchronous>, transform_indices = @transform_3, window_bounds = array<i64: 1, 80>}, {pipeline_mode = #tpu.pipeline_mode<synchronous>, transform_indices = @transform_4, window_bounds = array<i64: 1, 80>}, {pipeline_mode = #tpu.pipeline_mode<synchronous>, transform_indices = @transform_5, window_bounds = array<i64: 80, 16>}, {pipeline_mode = #tpu.pipeline_mode<synchronous>, transform_indices = @transform_6, window_bounds = array<i64: 1, 16>}, {transform_indices = @transform_7, window_bounds = array<i64: 16, 16>}]} {
    %c0 = arith.constant 0 : index
    %c0_0 = arith.constant 0 : index
    %0 = vector.load %arg1[%c0, %c0_0] : memref<16x80xf32, #tpu.memory_space<vmem>>, vector<16x80xf32>
    %c0_1 = arith.constant 0 : index
    %c0_2 = arith.constant 0 : index
    %1 = vector.load %arg2[%c0_1, %c0_2] : memref<80x80xf32, #tpu.memory_space<vmem>>, vector<80x80xf32>
    %cst = arith.constant dense<0.000000e+00> : vector<16x80xf32>
    %2 = tpu.matmul %0, %1, %cst {dimension_numbers = #tpu.dot_dimension_numbers<[1], [0], [0], [1], [0, 0, 1, 1], [], []>} : vector<16x80xf32>, vector<80x80xf32>, vector<16x80xf32> -> vector<16x80xf32>
    %c0_3 = arith.constant 0 : index
    %c0_4 = arith.constant 0 : index
    %3 = vector.load %arg4[%c0_3, %c0_4] : memref<1x80xf32, #tpu.memory_space<vmem>>, vector<1x80xf32>
    %4 = vector.broadcast %3 : vector<1x80xf32> to vector<16x80xf32>
    %5 = arith.addf %2, %4 : vector<16x80xf32>
    %c0_5 = arith.constant 0 : index
    %c0_6 = arith.constant 0 : index
    %6 = vector.load %arg3[%c0_5, %c0_6] : memref<80x80xf32, #tpu.memory_space<vmem>>, vector<80x80xf32>
    %cst_7 = arith.constant dense<0.000000e+00> : vector<16x80xf32>
    %7 = tpu.matmul %0, %6, %cst_7 {dimension_numbers = #tpu.dot_dimension_numbers<[1], [0], [0], [1], [0, 0, 1, 1], [], []>} : vector<16x80xf32>, vector<80x80xf32>, vector<16x80xf32> -> vector<16x80xf32>
    %c0_8 = arith.constant 0 : index
    %c0_9 = arith.constant 0 : index
    %8 = vector.load %arg5[%c0_8, %c0_9] : memref<1x80xf32, #tpu.memory_space<vmem>>, vector<1x80xf32>
    %9 = vector.broadcast %8 : vector<1x80xf32> to vector<16x80xf32>
    %10 = arith.addf %7, %9 : vector<16x80xf32>
    %11 = arith.maximumf %5, %10 : vector<16x80xf32>
    %cst_10 = arith.constant 0.000000e+00 : f32
    %12 = vector.broadcast %cst_10 : f32 to vector<16x80xf32>
    %13 = arith.maximumf %11, %12 : vector<16x80xf32>
    %c0_11 = arith.constant 0 : index
    %c0_12 = arith.constant 0 : index
    %14 = vector.load %arg6[%c0_11, %c0_12] : memref<80x16xf32, #tpu.memory_space<vmem>>, vector<80x16xf32>
    %cst_13 = arith.constant dense<0.000000e+00> : vector<16x16xf32>
    %15 = tpu.matmul %13, %14, %cst_13 {dimension_numbers = #tpu.dot_dimension_numbers<[1], [0], [0], [1], [0, 0, 1, 1], [], []>} : vector<16x80xf32>, vector<80x16xf32>, vector<16x16xf32> -> vector<16x16xf32>
    %c0_14 = arith.constant 0 : index
    %c0_15 = arith.constant 0 : index
    %16 = vector.load %arg7[%c0_14, %c0_15] : memref<1x16xf32, #tpu.memory_space<vmem>>, vector<1x16xf32>
    %17 = vector.broadcast %16 : vector<1x16xf32> to vector<16x16xf32>
    %18 = arith.addf %15, %17 : vector<16x16xf32>
    %c0_16 = arith.constant 0 : index
    %c0_17 = arith.constant 0 : index
    %19 = vector.load %arg8[%c0_16, %c0_17] : memref<16x16xf32, #tpu.memory_space<vmem>>, vector<16x16xf32>
    tpu.vector_store %arg8[%c0_16, %c0_17], %18 {strides = array<i32>} : memref<16x16xf32, #tpu.memory_space<vmem>>, vector<16x16xf32>,
    return
  }
  func.func @transform_0(%arg0: i32) -> (i32, i32) {
    %c0_i32 = arith.constant 0 : i32
    %c0_i32_0 = arith.constant 0 : i32
    return %arg0, %c0_i32 : i32, i32
  }
  func.func @transform_1(%arg0: i32) -> (i32, i32) {
    %c0_i32 = arith.constant 0 : i32
    %c0_i32_0 = arith.constant 0 : i32
    %c0_i32_1 = arith.constant 0 : i32
    return %c0_i32, %c0_i32_0 : i32, i32
  }
  func.func @transform_2(%arg0: i32) -> (i32, i32) {
    %c0_i32 = arith.constant 0 : i32
    %c0_i32_0 = arith.constant 0 : i32
    %c0_i32_1 = arith.constant 0 : i32
    return %c0_i32, %c0_i32_0 : i32, i32
  }
  func.func @transform_3(%arg0: i32) -> (i32, i32) {
    %c0_i32 = arith.constant 0 : i32
    %c0_i32_0 = arith.constant 0 : i32
    %c0_i32_1 = arith.constant 0 : i32
    return %c0_i32, %c0_i32_0 : i32, i32
  }
  func.func @transform_4(%arg0: i32) -> (i32, i32) {
    %c0_i32 = arith.constant 0 : i32
    %c0_i32_0 = arith.constant 0 : i32
    %c0_i32_1 = arith.constant 0 : i32
    return %c0_i32, %c0_i32_0 : i32, i32
  }
  func.func @transform_5(%arg0: i32) -> (i32, i32) {
    %c0_i32 = arith.constant 0 : i32
    %c0_i32_0 = arith.constant 0 : i32
    %c0_i32_1 = arith.constant 0 : i32
    return %c0_i32, %c0_i32_0 : i32, i32
  }
  func.func @transform_6(%arg0: i32) -> (i32, i32) {
    %c0_i32 = arith.constant 0 : i32
    %c0_i32_0 = arith.constant 0 : i32
    %c0_i32_1 = arith.constant 0 : i32
    return %c0_i32, %c0_i32_0 : i32, i32
  }
  func.func @transform_7(%arg0: i32) -> (i32, i32) {
    %c0_i32 = arith.constant 0 : i32
    %c0_i32_0 = arith.constant 0 : i32
    return %arg0, %c0_i32 : i32, i32
  }
}

</mosaic_0001>

<llo_original>
// kernel: tpu_custom_call.1
$region0: #{tpu_custom_call.1}
  #allocation0 [shape = 'u32[]', space=smem, size = 0x4, offset = 0x4, fixed_abs, tag = 'smem constant byte address 0x4 - core index']
  #allocation1 [shape = 'u32[144,128]{1,0:T(1,128)}', space=vmem, size = 0x12000, scoped, tag = 'internal scratch']
  %s0 = inlined_call_operand.vmem [shape: f32[16,80], index: 0, kind: input, shape index: {}]
  %s1 = inlined_call_operand.vmem [shape: f32[80,80], index: 1, kind: input, shape index: {}]
  %s2 = inlined_call_operand.hbm [shape: f32[80,80], index: 2, kind: input, shape index: {}]
  %s3 = inlined_call_operand.vmem [shape: f32[1,80], index: 3, kind: input, shape index: {}]
  %s4 = inlined_call_operand.vmem [shape: f32[1,80], index: 4, kind: input, shape index: {}]
  %s5 = inlined_call_operand.vmem [shape: f32[80,16], index: 5, kind: input, shape index: {}]
  %s6 = inlined_call_operand.vmem [shape: f32[1,16], index: 6, kind: input, shape index: {}]
  %s7 = inlined_call_operand.hbm [shape: f32[16,16], index: 7, kind: output, shape index: {}]
  %s8 = sld [smem:[#allocation0]]
  $region42: #{tpu_custom_call.1} parent=0
    _
  %s10 = ssub.s32 1, %s8
  %s11 = scalar_select 0, %s10, %s8
  $region1: #{tpu_custom_call.1} parent=0
    #allocation2 [shape = 'u8[40960]{0}', space=vmem, size = 0xa000, scoped, tag = 'input window, operand 2, single buffered']
    #allocation3 [shape = 's32[1]{0}', space=sflag, size = 0x4, scoped, tag = 'scoped memory for tpu_custom_call.1']
    #allocation4 [shape = 's32[1]{0}', space=sflag, size = 0x4, scoped, tag = 'scoped memory for tpu_custom_call.1']
    #allocation5 [shape = 'u8[8192]{0}', space=vmem, size = 0x2000, scoped, tag = 'output window, operand 0, single buffered']
    %12 = vsyncpa [#allocation3], 0
    %13 = vsyncpa [#allocation4], 0
    // Predicated region
    $region2: #{tpu_custom_call.1} parent=1 // pred_check
      _
    $region3: #{tpu_custom_call.1} parent=1 // pred_check_branch
      %15 = sbr.rel (0) target = $region5
    $region4: #{tpu_custom_call.1} parent=1 // pred_region
      _
    $region5: #{tpu_custom_call.1} parent=1 // pred_fallthru
      _
    // Predicated region
    $region6: #{tpu_custom_call.1} parent=1 // pred_check
      _
    $region7: #{tpu_custom_call.1} parent=1 // pred_check_branch
      %17 = sbr.rel (0) target = $region9
    $region8: #{tpu_custom_call.1} parent=1 // pred_region
      _
    $region9: #{tpu_custom_call.1} parent=1 // pred_fallthru
      _
    // Predicated region
    $region10: #{tpu_custom_call.1} parent=1 // pred_check
      _
    $region11: #{tpu_custom_call.1} parent=1 // pred_check_branch
      %19 = sbr.rel (0) target = $region13
    $region12: #{tpu_custom_call.1} parent=1 // pred_region
      %s21 = ssub.s32 1280, 1280
      %22 = vsyncadd [#allocation3], %s21
      %s23 = sshll.u32 [#allocation2], 4
      %s24 = int_to_ptr.vmem [resolvable:$true] %s23
      %29 = dma.hbm_to_vmem [thread:$0]  %s2, 1280, %s24, [#allocation3], 128, 128, 8
    $region13: #{tpu_custom_call.1} parent=1 // pred_fallthru
      _
    // Predicated region
    $region14: #{tpu_custom_call.1} parent=1 // pred_check
      _
    $region15: #{tpu_custom_call.1} parent=1 // pred_check_branch
      %31 = sbr.rel (0) target = $region17
    $region16: #{tpu_custom_call.1} parent=1 // pred_region
      _
    $region17: #{tpu_custom_call.1} parent=1 // pred_fallthru
      _
    // Predicated region
    $region18: #{tpu_custom_call.1} parent=1 // pred_check
      _
    $region19: #{tpu_custom_call.1} parent=1 // pred_check_branch
      %33 = sbr.rel (0) target = $region21
    $region20: #{tpu_custom_call.1} parent=1 // pred_region
      _
    $region21: #{tpu_custom_call.1} parent=1 // pred_fallthru
      _
    // Predicated region
    $region22: #{tpu_custom_call.1} parent=1 // pred_check
      _
    $region23: #{tpu_custom_call.1} parent=1 // pred_check_branch
      %35 = sbr.rel (0) target = $region25
    $region24: #{tpu_custom_call.1} parent=1 // pred_region
      _
    $region25: #{tpu_custom_call.1} parent=1 // pred_fallthru
      _
    // Predicated region
    $region26: #{tpu_custom_call.1} parent=1 // pred_check
      _
    $region27: #{tpu_custom_call.1} parent=1 // pred_check_branch
      %37 = sbr.rel (0) target = $region29
    $region28: #{tpu_custom_call.1} parent=1 // pred_region
      _
    $region29: #{tpu_custom_call.1} parent=1 // pred_fallthru
      _
    // Predicated region
    $region30: #{tpu_custom_call.1} parent=1 // pred_check
      _
    $region31: #{tpu_custom_call.1} parent=1 // pred_check_branch
      %39 = sbr.rel (0) target = $region33
    $region32: #{tpu_custom_call.1} parent=1 // pred_region
      %40 = dma.done [#allocation3], 1280
    $region33: #{tpu_custom_call.1} parent=1 // pred_fallthru
      _
    %v41 = vld [vmem:[%s0] sm:$0xff]
    %v42 = vld [vmem:[%s0 + $0x8] sm:$0xff]
    %v43 = vld [vmem:[%s1] sm:$0xff]
    %v44 = vld [vmem:[%s1 + $0x8] sm:$0xff]
    %v45 = vld [vmem:[%s1 + $0x10] sm:$0xff]
    %v46 = vld [vmem:[%s1 + $0x18] sm:$0xff]
    %v47 = vld [vmem:[%s1 + $0x20] sm:$0xff]
    %v48 = vld [vmem:[%s1 + $0x28] sm:$0xff]
    %v49 = vld [vmem:[%s1 + $0x30] sm:$0xff]
    %v50 = vld [vmem:[%s1 + $0x38] sm:$0xff]
    %v51 = vld [vmem:[%s1 + $0x40] sm:$0xff]
    %v52 = vld [vmem:[%s1 + $0x48] sm:$0xff]
    %v53 = vld [vmem:[%s3] sm:$0x1]
    %v55 = vlaneseq
    %v56 = vshrl.u32 %v55, 7
    %v57 = vsub.s32 0, %v56
    %v58 = vrot.slane %v53, %v57
    %vm60 = vcmask 654336
    %v62 = vsel %vm60, %v41, 0
    %v65 = vsel %vm60, %v42, 0
    %67 = vmatprep.subr.mxu0 0.0
    %68 = vmatpush1.msra.mxu0 %v43
    %69 = vmatprep.subr.mxu0 0.0
    %70 = vmatpush1.msra.mxu0 %v44
    %71 = vmatprep.subr.mxu0 0.0
    %72 = vmatpush1.msra.mxu0 %v45
    %73 = vmatprep.subr.mxu0 0.0
    %74 = vmatpush1.msra.mxu0 %v46
    %75 = vmatprep.subr.mxu0 0.0
    %76 = vmatpush1.msra.mxu0 %v47
    %77 = vmatprep.subr.mxu0 0.0
    %78 = vmatpush1.msra.mxu0 %v48
    %79 = vmatprep.subr.mxu0 0.0
    %80 = vmatpush1.msra.mxu0 %v49
    %81 = vmatprep.subr.mxu0 0.0
    %82 = vmatpush1.msra.mxu0 %v50
    %83 = vmatprep.subr.mxu0 0.0
    %84 = vmatpush1.msra.mxu0 %v51
    %85 = vmatprep.subr.mxu0 0.0
    %86 = vmatpush1.msra.mxu0 %v52
    %87 = vmatprep.subr.mxu0 0.0
    %88 = vmatpush1.msra.mxu0 0.0
    %89 = vmatprep.subr.mxu0 0.0
    %90 = vmatpush1.msra.mxu0 0.0
    %91 = vmatprep.subr.mxu0 0.0
    %92 = vmatpush1.msra.mxu0 0.0
    %93 = vmatprep.subr.mxu0 0.0
    %94 = vmatpush1.msra.mxu0 0.0
    %95 = vmatprep.subr.mxu0 0.0
    %96 = vmatpush1.msra.mxu0 0.0
    %97 = vmatprep.subr.mxu0 0.0
    %98 = vmatpush1.msra.mxu0 0.0
    %99 = vmatprep.subr.mxu0 0.0
    %100 = vmatpush1.msra.mxu0 0.0
    %101 = vmatprep.subr.mxu0 0.0
    %102 = vmatpush1.msra.mxu0 0.0
    %103 = vmatprep.subr.mxu0 0.0
    %104 = vmatpush1.msra.mxu0 0.0
    %105 = vmatprep.subr.mxu0 0.0
    %106 = vmatpush1.msra.mxu0 0.0
    %107 = vmatprep.subr.mxu0 0.0
    %108 = vmatpush1.msra.mxu0 0.0
    %109 = vmatprep.subr.mxu0 0.0
    %110 = vmatpush1.msra.mxu0 0.0
    %111 = vmatprep.subr.mxu0 0.0
    %112 = vmatpush1.msra.mxu0 0.0
    %113 = vmatprep.subr.mxu0 0.0
    %114 = vmatpush1.msra.mxu0 0.0
    %115 = vmatprep.subr.mxu0 0.0
    %116 = vmatpush1.msra.mxu0 0.0
    %117 = vmatprep.subr.mxu0 0.0
    %118 = vmatpush1.msra.mxu0 0.0
    %119 = vmatprep.subr.mxu0 0.0
    %120 = vmatpush1.msra.mxu0 0.0
    %121 = vmatprep.subr.mxu0 0.0
    %122 = vmatpush1.msra.mxu0 0.0
    %123 = vmatprep.subr.mxu0 0.0
    %124 = vmatpush1.msra.mxu0 0.0
    %125 = vmatprep.subr.mxu0 0.0
    %126 = vmatpush1.msra.mxu0 0.0
    %127 = vmatprep.subr.mxu0 0.0
    %128 = vmatpush1.msra.mxu0 0.0
    %129 = vmatprep.subr.mxu0 0.0
    %130 = vmatpush1.msra.mxu0 0.0
    %131 = vmatprep.mubr.f32.mxu0 0.0
    %132 = vmatmul.mubr.f32.gmra.mrb[0].mxu0 %v62
    %v133 = vpop.f32.mrb[0].mxu0
    %v134 = vadd.f32 %v58, %v133
    %v135 = vpop.f32.mrb[0].mxu0
    %136 = vmatprep.mubr.f32.mxu0 0.0
    %137 = vmatmul.mubr.f32.gmra.mrb[0].mxu0 %v65
    %v138 = vpop.f32.mrb[0].mxu0
    %v139 = vadd.f32 %v58, %v138
    %v140 = vpop.f32.mrb[0].mxu0
    %141 = vdwg.mxu0
    %v142 = vld [vmem:[#allocation2] sm:$0xff]
    %v143 = vld [vmem:[#allocation2 + $0x8] sm:$0xff]
    %v144 = vld [vmem:[#allocation2 + $0x10] sm:$0xff]
    %v145 = vld [vmem:[#allocation2 + $0x18] sm:$0xff]
    %v146 = vld [vmem:[#allocation2 + $0x20] sm:$0xff]
    %v147 = vld [vmem:[#allocation2 + $0x28] sm:$0xff]
    %v148 = vld [vmem:[#allocation2 + $0x30] sm:$0xff]
    %v149 = vld [vmem:[#allocation2 + $0x38] sm:$0xff]
    %v150 = vld [vmem:[#allocation2 + $0x40] sm:$0xff]
    %v151 = vld [vmem:[#allocation2 + $0x48] sm:$0xff]
    %v152 = vld [vmem:[%s4] sm:$0x1]
    %v154 = vlaneseq
    %v155 = vshrl.u32 %v154, 7
    %v156 = vsub.s32 0, %v155
    %v157 = vrot.slane %v152, %v156
    %159 = vmatprep.subr.mxu0 0.0
    %160 = vmatpush1.msra.mxu0 %v142
    %161 = vmatprep.subr.mxu0 0.0
    %162 = vmatpush1.msra.mxu0 %v143
    %163 = vmatprep.subr.mxu0 0.0
    %164 = vmatpush1.msra.mxu0 %v144
    %165 = vmatprep.subr.mxu0 0.0
    %166 = vmatpush1.msra.mxu0 %v145
    %167 = vmatprep.subr.mxu0 0.0
    %168 = vmatpush1.msra.mxu0 %v146
    %169 = vmatprep.subr.mxu0 0.0
    %170 = vmatpush1.msra.mxu0 %v147
    %171 = vmatprep.subr.mxu0 0.0
    %172 = vmatpush1.msra.mxu0 %v148
    %173 = vmatprep.subr.mxu0 0.0
    %174 = vmatpush1.msra.mxu0 %v149
    %175 = vmatprep.subr.mxu0 0.0
    %176 = vmatpush1.msra.mxu0 %v150
    %177 = vmatprep.subr.mxu0 0.0
    %178 = vmatpush1.msra.mxu0 %v151
    %179 = vmatprep.subr.mxu0 0.0
    %180 = vmatpush1.msra.mxu0 0.0
    %181 = vmatprep.subr.mxu0 0.0
    %182 = vmatpush1.msra.mxu0 0.0
    %183 = vmatprep.subr.mxu0 0.0
    %184 = vmatpush1.msra.mxu0 0.0
    %185 = vmatprep.subr.mxu0 0.0
    %186 = vmatpush1.msra.mxu0 0.0
    %187 = vmatprep.subr.mxu0 0.0
    %188 = vmatpush1.msra.mxu0 0.0
    %189 = vmatprep.subr.mxu0 0.0
    %190 = vmatpush1.msra.mxu0 0.0
    %191 = vmatprep.subr.mxu0 0.0
    %192 = vmatpush1.msra.mxu0 0.0
    %193 = vmatprep.subr.mxu0 0.0
    %194 = vmatpush1.msra.mxu0 0.0
    %195 = vmatprep.subr.mxu0 0.0
    %196 = vmatpush1.msra.mxu0 0.0
    %197 = vmatprep.subr.mxu0 0.0
    %198 = vmatpush1.msra.mxu0 0.0
    %199 = vmatprep.subr.mxu0 0.0
    %200 = vmatpush1.msra.mxu0 0.0
    %201 = vmatprep.subr.mxu0 0.0
    %202 = vmatpush1.msra.mxu0 0.0
    %203 = vmatprep.subr.mxu0 0.0
    %204 = vmatpush1.msra.mxu0 0.0
    %205 = vmatprep.subr.mxu0 0.0
    %206 = vmatpush1.msra.mxu0 0.0
    %207 = vmatprep.subr.mxu0 0.0
    %208 = vmatpush1.msra.mxu0 0.0
    %209 = vmatprep.subr.mxu0 0.0
    %210 = vmatpush1.msra.mxu0 0.0
    %211 = vmatprep.subr.mxu0 0.0
    %212 = vmatpush1.msra.mxu0 0.0
    %213 = vmatprep.subr.mxu0 0.0
    %214 = vmatpush1.msra.mxu0 0.0
    %215 = vmatprep.subr.mxu0 0.0
    %216 = vmatpush1.msra.mxu0 0.0
    %217 = vmatprep.subr.mxu0 0.0
    %218 = vmatpush1.msra.mxu0 0.0
    %219 = vmatprep.subr.mxu0 0.0
    %220 = vmatpush1.msra.mxu0 0.0
    %221 = vmatprep.subr.mxu0 0.0
    %222 = vmatpush1.msra.mxu0 0.0
    %223 = vmatprep.mubr.f32.mxu0 0.0
    %224 = vmatmul.mubr.f32.gmra.mrb[0].mxu0 %v62
    %v225 = vpop.f32.mrb[0].mxu0
    %v226 = vadd.f32 %v157, %v225
    %v227 = vpop.f32.mrb[0].mxu0
    %228 = vmatprep.mubr.f32.mxu0 0.0
    %229 = vmatmul.mubr.f32.gmra.mrb[0].mxu0 %v65
    %v230 = vpop.f32.mrb[0].mxu0
    %v231 = vadd.f32 %v157, %v230
    %v232 = vpop.f32.mrb[0].mxu0
    %233 = vdwg.mxu0
    %v234 = vmax.f32 %v134, %v226
    %v235 = vmax.f32 %v139, %v231
    %v236 = vmax.f32 %v234, 0.0
    %v237 = vmax.f32 %v235, 0.0
    %v238 = vld [vmem:[%s5] sm:$0xff]
    %v239 = vld [vmem:[%s5 + $0x8] sm:$0xff]
    %v240 = vld [vmem:[%s5 + $0x10] sm:$0xff]
    %v241 = vld [vmem:[%s5 + $0x18] sm:$0xff]
    %v242 = vld [vmem:[%s5 + $0x20] sm:$0xff]
    %v243 = vld [vmem:[%s5 + $0x28] sm:$0xff]
    %v244 = vld [vmem:[%s5 + $0x30] sm:$0xff]
    %v245 = vld [vmem:[%s5 + $0x38] sm:$0xff]
    %v246 = vld [vmem:[%s5 + $0x40] sm:$0xff]
    %v247 = vld [vmem:[%s5 + $0x48] sm:$0xff]
    %v248 = vld [vmem:[%s6] sm:$0x1]
    %v250 = vlaneseq
    %v251 = vshrl.u32 %v250, 7
    %v252 = vsub.s32 0, %v251
    %v253 = vrot.slane %v248, %v252
    %v256 = vsel %vm60, %v236, 0
    %v259 = vsel %vm60, %v237, 0
    %261 = vmatprep.subr.mxu0 0.0
    %262 = vmatpush1.msra.mxu0 %v238
    %263 = vmatprep.subr.mxu0 0.0
    %264 = vmatpush1.msra.mxu0 %v239
    %265 = vmatprep.subr.mxu0 0.0
    %266 = vmatpush1.msra.mxu0 %v240
    %267 = vmatprep.subr.mxu0 0.0
    %268 = vmatpush1.msra.mxu0 %v241
    %269 = vmatprep.subr.mxu0 0.0
    %270 = vmatpush1.msra.mxu0 %v242
    %271 = vmatprep.subr.mxu0 0.0
    %272 = vmatpush1.msra.mxu0 %v243
    %273 = vmatprep.subr.mxu0 0.0
    %274 = vmatpush1.msra.mxu0 %v244
    %275 = vmatprep.subr.mxu0 0.0
    %276 = vmatpush1.msra.mxu0 %v245
    %277 = vmatprep.subr.mxu0 0.0
    %278 = vmatpush1.msra.mxu0 %v246
    %279 = vmatprep.subr.mxu0 0.0
    %280 = vmatpush1.msra.mxu0 %v247
    %281 = vmatprep.subr.mxu0 0.0
    %282 = vmatpush1.msra.mxu0 0.0
    %283 = vmatprep.subr.mxu0 0.0
    %284 = vmatpush1.msra.mxu0 0.0
    %285 = vmatprep.subr.mxu0 0.0
    %286 = vmatpush1.msra.mxu0 0.0
    %287 = vmatprep.subr.mxu0 0.0
    %288 = vmatpush1.msra.mxu0 0.0
    %289 = vmatprep.subr.mxu0 0.0
    %290 = vmatpush1.msra.mxu0 0.0
    %291 = vmatprep.subr.mxu0 0.0
    %292 = vmatpush1.msra.mxu0 0.0
    %293 = vmatprep.subr.mxu0 0.0
    %294 = vmatpush1.msra.mxu0 0.0
    %295 = vmatprep.subr.mxu0 0.0
    %296 = vmatpush1.msra.mxu0 0.0
    %297 = vmatprep.subr.mxu0 0.0
    %298 = vmatpush1.msra.mxu0 0.0
    %299 = vmatprep.subr.mxu0 0.0
    %300 = vmatpush1.msra.mxu0 0.0
    %301 = vmatprep.subr.mxu0 0.0
    %302 = vmatpush1.msra.mxu0 0.0
    %303 = vmatprep.subr.mxu0 0.0
    %304 = vmatpush1.msra.mxu0 0.0
    %305 = vmatprep.subr.mxu0 0.0
    %306 = vmatpush1.msra.mxu0 0.0
    %307 = vmatprep.subr.mxu0 0.0
    %308 = vmatpush1.msra.mxu0 0.0
    %309 = vmatprep.subr.mxu0 0.0
    %310 = vmatpush1.msra.mxu0 0.0
    %311 = vmatprep.subr.mxu0 0.0
    %312 = vmatpush1.msra.mxu0 0.0
    %313 = vmatprep.subr.mxu0 0.0
    %314 = vmatpush1.msra.mxu0 0.0
    %315 = vmatprep.subr.mxu0 0.0
    %316 = vmatpush1.msra.mxu0 0.0
    %317 = vmatprep.subr.mxu0 0.0
    %318 = vmatpush1.msra.mxu0 0.0
    %319 = vmatprep.subr.mxu0 0.0
    %320 = vmatpush1.msra.mxu0 0.0
    %321 = vmatprep.subr.mxu0 0.0
    %322 = vmatpush1.msra.mxu0 0.0
    %323 = vmatprep.subr.mxu0 0.0
    %324 = vmatpush1.msra.mxu0 0.0
    %325 = vmatprep.mubr.f32.mxu0 0.0
    %326 = vmatmul.mubr.f32.gmra.mrb[0].mxu0 %v256
    %v327 = vpop.f32.mrb[0].mxu0
    %v328 = vadd.f32 %v253, %v327
    %v329 = vpop.f32.mrb[0].mxu0
    %330 = vmatprep.mubr.f32.mxu0 0.0
    %331 = vmatmul.mubr.f32.gmra.mrb[0].mxu0 %v259
    %v332 = vpop.f32.mrb[0].mxu0
    %v333 = vadd.f32 %v253, %v332
    %v334 = vpop.f32.mrb[0].mxu0
    %335 = vdwg.mxu0
    %vm336 = vcmask 130048
    %337 = vst.msk [vmem:[#allocation5] sm:$0xff] %vm336, %v328
    %338 = vst.msk [vmem:[#allocation5 + $0x8] sm:$0xff] %vm336, %v333
    // Predicated region
    $region34: #{tpu_custom_call.1} parent=1 // pred_check
      _
    $region35: #{tpu_custom_call.1} parent=1 // pred_check_branch
      %340 = sbr.rel (0) target = $region37
    $region36: #{tpu_custom_call.1} parent=1 // pred_region
      %s342 = ssub.s32 256, 256
      %343 = vsyncadd [#allocation4], %s342
      %s344 = sshll.u32 [#allocation5], 4
      %s345 = int_to_ptr.vmem [resolvable:$true] %s344
      %350 = dma.vmem_to_hbm [thread:$0]  %s345, 256, %s7, [#allocation4], 128, 128, 8
    $region37: #{tpu_custom_call.1} parent=1 // pred_fallthru
      _
    // Predicated region
    $region38: #{tpu_custom_call.1} parent=1 // pred_check
      _
    $region39: #{tpu_custom_call.1} parent=1 // pred_check_branch
      %352 = sbr.rel (0) target = $region41
    $region40: #{tpu_custom_call.1} parent=1 // pred_region
      %353 = dma.done [#allocation4], 256
    $region41: #{tpu_custom_call.1} parent=1 // pred_fallthru
      _
    %354 = vsyncpa [#allocation3], 1
    %355 = vsyncpa [#allocation4], 1

</llo_original>
